<compile_context>
chip_gen: v5e
topology: v5e:2x2
jax: 0.10.0
libtpu: 0.0.40
codegen_flags: <defaults>
</compile_context>

<pallas_src>
import jax
import jax.numpy as jnp
from jax.experimental import pallas as pl
from jax.experimental.pallas import tpu as pltpu


def _slstm_kernel(x_ref, s_ref, w_ref, r_ref, b_ref, fcw_ref, fcb_ref,
                  out_ref, s_out_ref):
    H = s_ref.shape[1] // 4

    x = x_ref[...]
    s = s_ref[...]
    h_prev = s[:, 0 * H:1 * H]
    c_prev = s[:, 1 * H:2 * H]
    n_prev = s[:, 2 * H:3 * H]
    m_prev = s[:, 3 * H:4 * H]

    # Fused gate pre-activations: [B, 4H] = x @ W + h_prev @ R + b
    gates = (jnp.dot(x, w_ref[...], preferred_element_type=jnp.float32)
             + jnp.dot(h_prev, r_ref[...], preferred_element_type=jnp.float32)
             + b_ref[...])

    # NOTE: for production sizes make H a multiple of 128 so these gate slices
    # (and the packed-state stores below) stay full-lane-tile aligned.
    i_tilda = gates[:, 0 * H:1 * H]
    f_tilda = gates[:, 1 * H:2 * H]
    o_tilda = gates[:, 2 * H:3 * H]
    z_tilda = gates[:, 3 * H:4 * H]

    # log(i_t) == i_tilda exactly; use it directly (no exp/log round trip).
    # log(f_t) via stable log-sigmoid: min(f,0) - log(1 + exp(-|f|)).
    log_f = jnp.minimum(f_tilda, 0.0) - jnp.log(1.0 + jnp.exp(-jnp.abs(f_tilda)))

    o_t = 1.0 / (1.0 + jnp.exp(-o_tilda))      # sigmoid (EUP exp + VPU recip)
    z_t = jnp.tanh(z_tilda)

    m_t = jnp.maximum(log_f + m_prev, i_tilda)
    i_prime = jnp.exp(i_tilda - m_t)
    f_prime = jnp.exp(log_f + m_prev - m_t)

    c_t = f_prime * c_prev + i_prime * z_t
    n_t = f_prime * n_prev + i_prime
    h_t = o_t * (c_t / n_t)

    # fc: Linear(hidden, 1) as VPU multiply + lane reduction.
    out = jnp.sum(h_t * fcw_ref[...], axis=-1, keepdims=True) + fcb_ref[...]
    out_ref[...] = out.astype(out_ref.dtype)

    # Single lane-dense packed-state output block [B, 4H].
    s_out_ref[:, 0 * H:1 * H] = h_t.astype(s_out_ref.dtype)
    s_out_ref[:, 1 * H:2 * H] = c_t.astype(s_out_ref.dtype)
    s_out_ref[:, 2 * H:3 * H] = n_t.astype(s_out_ref.dtype)
    s_out_ref[:, 3 * H:4 * H] = m_t.astype(s_out_ref.dtype)


def slstm_cell_forward(x, states, params, *, block_b=None):
    """Pallas-backed sLSTMCell forward.

    x: [B, input_size]; states = (h, c, n, m) each [B, hidden].
    params = (W [input,4H], R [H,4H], b [1,4H], fcw [H,1], fcb [1,1]).
    Returns (out [B, 1], (h_t, c_t, n_t, m_t)).
    """
    h_prev, c_prev, n_prev, m_prev = states
    W, R, b, fcw, fcb = params
    B, H = h_prev.shape
    I = x.shape[1]

    # Pack the four recurrent states lane-dense: [B, 4H] = h | c | n | m.
    s_packed = jnp.concatenate([h_prev, c_prev, n_prev, m_prev], axis=1)
    fcw_row = fcw.reshape(1, H)

    if block_b is None:
        block_b = B if B <= 128 else 128
    assert B % block_b == 0, "batch must be divisible by block_b"
    grid = (B // block_b,)

    grid_spec = pltpu.PrefetchScalarGridSpec(
        num_scalar_prefetch=0,
        grid=grid,
        in_specs=[
            pl.BlockSpec((block_b, I), lambda i: (i, 0)),        # x
            pl.BlockSpec((block_b, 4 * H), lambda i: (i, 0)),    # packed state
            pl.BlockSpec((I, 4 * H), lambda i: (0, 0)),          # W (replicated)
            pl.BlockSpec((H, 4 * H), lambda i: (0, 0)),          # R (replicated)
            pl.BlockSpec((1, 4 * H), lambda i: (0, 0)),          # bias
            pl.BlockSpec((1, H), lambda i: (0, 0)),              # fc weight row
            pl.BlockSpec((1, 1), lambda i: (0, 0)),              # fc bias
        ],
        out_specs=(
            pl.BlockSpec((block_b, 1), lambda i: (i, 0)),        # out
            pl.BlockSpec((block_b, 4 * H), lambda i: (i, 0)),    # packed state
        ),
    )

    out, s_next = pl.pallas_call(
        _slstm_kernel,
        out_shape=(
            jax.ShapeDtypeStruct((B, 1), jnp.float32),
            jax.ShapeDtypeStruct((B, 4 * H), jnp.float32),
        ),
        grid_spec=grid_spec,
        # In-place recurrent-state update: the packed-state input buffer is
        # reused as the packed-state output buffer.
        input_output_aliases={1: 1},
        compiler_params=pltpu.CompilerParams(
            dimension_semantics=("parallel",)),
    )(x, s_packed, W, R, b, fcw_row, fcb)

    h_t = s_next[:, 0 * H:1 * H]
    c_t = s_next[:, 1 * H:2 * H]
    n_t = s_next[:, 2 * H:3 * H]
    m_t = s_next[:, 3 * H:4 * H]
    return out, (h_t, c_t, n_t, m_t)


# ----------------------- deterministic parameter init -----------------------

def _xavier_uniform(key, shape):
    fan_in, fan_out = shape
    bound = (6.0 / (fan_in + fan_out)) ** 0.5
    return jax.random.uniform(key, shape, jnp.float32, -bound, bound)


def _orthogonal(key, n):
    a = jax.random.normal(key, (n, n), jnp.float32)
    q, r = jnp.linalg.qr(a)
    q = q * jnp.sign(jnp.diag(r))[None, :]
    return q


def init_slstm_params(key, input_size, hidden_size):
    keys = jax.random.split(key, 10)
    w_i = _xavier_uniform(keys[0], (input_size, hidden_size))
    w_f = _xavier_uniform(keys[1], (input_size, hidden_size))
    w_o = _xavier_uniform(keys[2], (input_size, hidden_size))
    w_z = _xavier_uniform(keys[3], (input_size, hidden_size))
    r_i = _orthogonal(keys[4], hidden_size)
    r_f = _orthogonal(keys[5], hidden_size)
    r_o = _orthogonal(keys[6], hidden_size)
    r_z = _orthogonal(keys[7], hidden_size)
    b = jnp.zeros((1, 4 * hidden_size), jnp.float32)  # b_i|b_f|b_o|b_z
    bound = 1.0 / (hidden_size ** 0.5)
    fcw = jax.random.uniform(keys[8], (hidden_size, 1), jnp.float32, -bound, bound)
    fcb = jax.random.uniform(keys[9], (1, 1), jnp.float32, -bound, bound)

    W = jnp.concatenate([w_i, w_f, w_o, w_z], axis=1)   # [input, 4H]
    R = jnp.concatenate([r_i, r_f, r_o, r_z], axis=1)   # [H, 4H]
    return W, R, b, fcw, fcb


# ------------------------------ reference (JAX) ------------------------------

def slstm_reference(x, states, params):
    h_prev, c_prev, n_prev, m_prev = states
    W, R, b, fcw, fcb = params
    gates = x @ W + h_prev @ R + b
    i_tilda, f_tilda, o_tilda, z_tilda = jnp.split(gates, 4, axis=1)
    i_t = jnp.exp(i_tilda)
    f_t = jax.nn.sigmoid(f_tilda)
    o_t = jax.nn.sigmoid(o_tilda)
    z_t = jnp.tanh(z_tilda)
    m_t = jnp.maximum(jnp.log(f_t) + m_prev, jnp.log(i_t))
    i_prime = jnp.exp(i_tilda - m_t)
    f_prime = jnp.exp(jnp.log(f_t) + m_prev - m_t)
    c_t = f_prime * c_prev + i_prime * z_t
    n_t = f_prime * n_prev + i_prime
    h_t = o_t * (c_t / n_t)
    out = h_t @ fcw + fcb
    return out, (h_t, c_t, n_t, m_t)


if __name__ == "__main__":
    B, INPUT, HIDDEN = 8, 16, 32

    key = jax.random.PRNGKey(0)
    k_x, k_h, k_c, k_n, k_m, k_p = jax.random.split(key, 6)

    x = jax.random.normal(k_x, (B, INPUT), jnp.float32)
    h0 = jax.random.normal(k_h, (B, HIDDEN), jnp.float32) * 0.1
    c0 = jax.random.normal(k_c, (B, HIDDEN), jnp.float32) * 0.1
    n0 = jnp.abs(jax.random.normal(k_n, (B, HIDDEN), jnp.float32)) + 1.0
    m0 = jax.random.normal(k_m, (B, HIDDEN), jnp.float32) * 0.1

    params = init_slstm_params(k_p, INPUT, HIDDEN)

    fwd = jax.jit(slstm_cell_forward)
    out, (h_t, c_t, n_t, m_t) = fwd(x, (h0, c0, n0, m0), params)
    jax.block_until_ready((out, h_t, c_t, n_t, m_t))

    # correctness check against a pure-JAX reference
    ref_out, (rh, rc, rn, rm) = slstm_reference(x, (h0, c0, n0, m0), params)
    for a, b_ in ((out, ref_out), (h_t, rh), (c_t, rc), (n_t, rn), (m_t, rm)):
        assert jnp.allclose(a, b_, atol=1e-4, rtol=1e-4), "mismatch vs reference"

    print("KERNEL_OK")
</pallas_src>

<mosaic_0001>
module attributes {stable_mosaic.version = 11 : i64} {
  func.func @_slstm_kernel(%arg0: i32, %arg1: memref<8x16xf32, #tpu.memory_space<vmem>>, %arg2: memref<8x128xf32, #tpu.memory_space<vmem>>, %arg3: memref<16x128xf32, #tpu.memory_space<vmem>>, %arg4: memref<32x128xf32, #tpu.memory_space<vmem>>, %arg5: memref<1x128xf32, #tpu.memory_space<vmem>>, %arg6: memref<1x32xf32, #tpu.memory_space<vmem>>, %arg7: memref<1x1xf32, #tpu.memory_space<vmem>>, %arg8: memref<8x1xf32, #tpu.memory_space<vmem>>, %arg9: memref<8x128xf32, #tpu.memory_space<vmem>>) attributes {dimension_semantics = [#tpu.dimension_semantics<parallel>], iteration_bounds = array<i64: 1>, scalar_prefetch = 0 : i64, scratch_operands = 0 : i64, tpu.core_type = #tpu.core_type<tc>, window_params = [{transform_indices = @transform_0, window_bounds = array<i64: 8, 16>}, {transform_indices = @transform_1, window_bounds = array<i64: 8, 128>}, {pipeline_mode = #tpu.pipeline_mode<synchronous>, transform_indices = @transform_2, window_bounds = array<i64: 16, 128>}, {pipeline_mode = #tpu.pipeline_mode<synchronous>, transform_indices = @transform_3, window_bounds = array<i64: 32, 128>}, {pipeline_mode = #tpu.pipeline_mode<synchronous>, transform_indices = @transform_4, window_bounds = array<i64: 1, 128>}, {pipeline_mode = #tpu.pipeline_mode<synchronous>, transform_indices = @transform_5, window_bounds = array<i64: 1, 32>}, {pipeline_mode = #tpu.pipeline_mode<synchronous>, transform_indices = @transform_6, window_bounds = array<i64: 1, 1>}, {transform_indices = @transform_7, window_bounds = array<i64: 8, 1>}, {transform_indices = @transform_8, window_bounds = array<i64: 8, 128>}]} {
    %c0 = arith.constant 0 : index
    %c0_0 = arith.constant 0 : index
    %0 = vector.load %arg1[%c0, %c0_0] : memref<8x16xf32, #tpu.memory_space<vmem>>, vector<8x16xf32>
    %c0_1 = arith.constant 0 : index
    %c0_2 = arith.constant 0 : index
    %1 = vector.load %arg2[%c0_1, %c0_2] : memref<8x128xf32, #tpu.memory_space<vmem>>, vector<8x128xf32>
    %2 = vector.extract_strided_slice %1 {offsets = [0, 0], sizes = [8, 32], strides = [1, 1]} : vector<8x128xf32> to vector<8x32xf32>
    %3 = vector.extract_strided_slice %1 {offsets = [0, 32], sizes = [8, 32], strides = [1, 1]} : vector<8x128xf32> to vector<8x32xf32>
    %4 = vector.extract_strided_slice %1 {offsets = [0, 64], sizes = [8, 32], strides = [1, 1]} : vector<8x128xf32> to vector<8x32xf32>
    %5 = vector.extract_strided_slice %1 {offsets = [0, 96], sizes = [8, 32], strides = [1, 1]} : vector<8x128xf32> to vector<8x32xf32>
    %c0_3 = arith.constant 0 : index
    %c0_4 = arith.constant 0 : index
    %6 = vector.load %arg3[%c0_3, %c0_4] : memref<16x128xf32, #tpu.memory_space<vmem>>, vector<16x128xf32>
    %cst = arith.constant dense<0.000000e+00> : vector<8x128xf32>
    %7 = tpu.matmul %0, %6, %cst {dimension_numbers = #tpu.dot_dimension_numbers<[1], [0], [0], [1], [0, 0, 1, 1], [], []>} : vector<8x16xf32>, vector<16x128xf32>, vector<8x128xf32> -> vector<8x128xf32>
    %c0_5 = arith.constant 0 : index
    %c0_6 = arith.constant 0 : index
    %8 = vector.load %arg4[%c0_5, %c0_6] : memref<32x128xf32, #tpu.memory_space<vmem>>, vector<32x128xf32>
    %cst_7 = arith.constant dense<0.000000e+00> : vector<8x128xf32>
    %9 = tpu.matmul %2, %8, %cst_7 {dimension_numbers = #tpu.dot_dimension_numbers<[1], [0], [0], [1], [0, 0, 1, 1], [], []>} : vector<8x32xf32>, vector<32x128xf32>, vector<8x128xf32> -> vector<8x128xf32>
    %10 = arith.addf %7, %9 : vector<8x128xf32>
    %c0_8 = arith.constant 0 : index
    %c0_9 = arith.constant 0 : index
    %11 = vector.load %arg5[%c0_8, %c0_9] : memref<1x128xf32, #tpu.memory_space<vmem>>, vector<1x128xf32>
    %12 = vector.broadcast %11 : vector<1x128xf32> to vector<8x128xf32>
    %13 = arith.addf %10, %12 : vector<8x128xf32>
    %14 = vector.extract_strided_slice %13 {offsets = [0, 0], sizes = [8, 32], strides = [1, 1]} : vector<8x128xf32> to vector<8x32xf32>
    %15 = vector.extract_strided_slice %13 {offsets = [0, 32], sizes = [8, 32], strides = [1, 1]} : vector<8x128xf32> to vector<8x32xf32>
    %16 = vector.extract_strided_slice %13 {offsets = [0, 64], sizes = [8, 32], strides = [1, 1]} : vector<8x128xf32> to vector<8x32xf32>
    %17 = vector.extract_strided_slice %13 {offsets = [0, 96], sizes = [8, 32], strides = [1, 1]} : vector<8x128xf32> to vector<8x32xf32>
    %cst_10 = arith.constant 0.000000e+00 : f32
    %18 = vector.broadcast %cst_10 : f32 to vector<8x32xf32>
    %19 = arith.minimumf %15, %18 : vector<8x32xf32>
    %20 = math.absf %15 : vector<8x32xf32>
    %cst_11 = arith.constant 0.000000e+00 : f32
    %21 = vector.broadcast %cst_11 : f32 to vector<8x32xf32>
    %22 = arith.subf %21, %20 : vector<8x32xf32>
    %23 = math.exp %22 : vector<8x32xf32>
    %cst_12 = arith.constant 1.000000e+00 : f32
    %24 = vector.broadcast %cst_12 : f32 to vector<8x32xf32>
    %25 = arith.addf %24, %23 : vector<8x32xf32>
    %26 = math.log %25 : vector<8x32xf32>
    %27 = arith.subf %19, %26 : vector<8x32xf32>
    %cst_13 = arith.constant 0.000000e+00 : f32
    %28 = vector.broadcast %cst_13 : f32 to vector<8x32xf32>
    %29 = arith.subf %28, %16 : vector<8x32xf32>
    %30 = math.exp %29 : vector<8x32xf32>
    %cst_14 = arith.constant 1.000000e+00 : f32
    %31 = vector.broadcast %cst_14 : f32 to vector<8x32xf32>
    %32 = arith.addf %31, %30 : vector<8x32xf32>
    %cst_15 = arith.constant 1.000000e+00 : f32
    %33 = vector.broadcast %cst_15 : f32 to vector<8x32xf32>
    %34 = arith.divf %33, %32 : vector<8x32xf32>
    %35 = math.tanh %17 : vector<8x32xf32>
    %36 = arith.addf %27, %5 : vector<8x32xf32>
    %37 = arith.maximumf %36, %14 : vector<8x32xf32>
    %38 = arith.subf %14, %37 : vector<8x32xf32>
    %39 = math.exp %38 : vector<8x32xf32>
    %40 = arith.addf %27, %5 : vector<8x32xf32>
    %41 = arith.subf %40, %37 : vector<8x32xf32>
    %42 = math.exp %41 : vector<8x32xf32>
    %43 = arith.mulf %42, %3 : vector<8x32xf32>
    %44 = arith.mulf %39, %35 : vector<8x32xf32>
    %45 = arith.addf %43, %44 : vector<8x32xf32>
    %46 = arith.mulf %42, %4 : vector<8x32xf32>
    %47 = arith.addf %46, %39 : vector<8x32xf32>
    %48 = arith.divf %45, %47 : vector<8x32xf32>
    %49 = arith.mulf %34, %48 : vector<8x32xf32>
    %c0_16 = arith.constant 0 : index
    %c0_17 = arith.constant 0 : index
    %50 = vector.load %arg6[%c0_16, %c0_17] : memref<1x32xf32, #tpu.memory_space<vmem>>, vector<1x32xf32>
    %51 = vector.broadcast %50 : vector<1x32xf32> to vector<8x32xf32>
    %52 = arith.mulf %49, %51 : vector<8x32xf32>
    %cst_18 = arith.constant dense<0.000000e+00> : vector<8xf32>
    %53 = vector.multi_reduction <add>, %52, %cst_18 [1] : vector<8x32xf32> to vector<8xf32>
    %54 = vector.shape_cast %53 : vector<8xf32> to vector<8x1xf32>
    %c0_19 = arith.constant 0 : index
    %c0_20 = arith.constant 0 : index
    %55 = vector.load %arg7[%c0_19, %c0_20] : memref<1x1xf32, #tpu.memory_space<vmem>>, vector<1x1xf32>
    %56 = vector.broadcast %55 : vector<1x1xf32> to vector<8x1xf32>
    %57 = arith.addf %54, %56 : vector<8x1xf32>
    %c0_21 = arith.constant 0 : index
    %c0_22 = arith.constant 0 : index
    %58 = vector.load %arg8[%c0_21, %c0_22] : memref<8x1xf32, #tpu.memory_space<vmem>>, vector<8x1xf32>
    tpu.vector_store %arg8[%c0_21, %c0_22], %57 {strides = array<i32>} : memref<8x1xf32, #tpu.memory_space<vmem>>, vector<8x1xf32>,
    %c0_23 = arith.constant 0 : index
    %c0_24 = arith.constant 0 : index
    %59 = vector.load %arg9[%c0_23, %c0_24] : memref<8x128xf32, #tpu.memory_space<vmem>>, vector<8x32xf32>
    tpu.vector_store %arg9[%c0_23, %c0_24], %49 {strides = array<i32>} : memref<8x128xf32, #tpu.memory_space<vmem>>, vector<8x32xf32>,
    %c0_25 = arith.constant 0 : index
    %c32 = arith.constant 32 : index
    %60 = vector.load %arg9[%c0_25, %c32] : memref<8x128xf32, #tpu.memory_space<vmem>>, vector<8x32xf32>
    tpu.vector_store %arg9[%c0_25, %c32], %45 {strides = array<i32>} : memref<8x128xf32, #tpu.memory_space<vmem>>, vector<8x32xf32>,
    %c0_26 = arith.constant 0 : index
    %c64 = arith.constant 64 : index
    %61 = vector.load %arg9[%c0_26, %c64] : memref<8x128xf32, #tpu.memory_space<vmem>>, vector<8x32xf32>
    tpu.vector_store %arg9[%c0_26, %c64], %47 {strides = array<i32>} : memref<8x128xf32, #tpu.memory_space<vmem>>, vector<8x32xf32>,
    %c0_27 = arith.constant 0 : index
    %c96 = arith.constant 96 : index
    %62 = vector.load %arg9[%c0_27, %c96] : memref<8x128xf32, #tpu.memory_space<vmem>>, vector<8x32xf32>
    tpu.vector_store %arg9[%c0_27, %c96], %37 {strides = array<i32>} : memref<8x128xf32, #tpu.memory_space<vmem>>, vector<8x32xf32>,
    return
  }
  func.func @transform_0(%arg0: i32) -> (i32, i32) {
    %c0_i32 = arith.constant 0 : i32
    %c0_i32_0 = arith.constant 0 : i32
    return %arg0, %c0_i32 : i32, i32
  }
  func.func @transform_1(%arg0: i32) -> (i32, i32) {
    %c0_i32 = arith.constant 0 : i32
    %c0_i32_0 = arith.constant 0 : i32
    return %arg0, %c0_i32 : i32, i32
  }
  func.func @transform_2(%arg0: i32) -> (i32, i32) {
    %c0_i32 = arith.constant 0 : i32
    %c0_i32_0 = arith.constant 0 : i32
    %c0_i32_1 = arith.constant 0 : i32
    return %c0_i32, %c0_i32_0 : i32, i32
  }
  func.func @transform_3(%arg0: i32) -> (i32, i32) {
    %c0_i32 = arith.constant 0 : i32
    %c0_i32_0 = arith.constant 0 : i32
    %c0_i32_1 = arith.constant 0 : i32
    return %c0_i32, %c0_i32_0 : i32, i32
  }
  func.func @transform_4(%arg0: i32) -> (i32, i32) {
    %c0_i32 = arith.constant 0 : i32
    %c0_i32_0 = arith.constant 0 : i32
    %c0_i32_1 = arith.constant 0 : i32
    return %c0_i32, %c0_i32_0 : i32, i32
  }
  func.func @transform_5(%arg0: i32) -> (i32, i32) {
    %c0_i32 = arith.constant 0 : i32
    %c0_i32_0 = arith.constant 0 : i32
    %c0_i32_1 = arith.constant 0 : i32
    return %c0_i32, %c0_i32_0 : i32, i32
  }
  func.func @transform_6(%arg0: i32) -> (i32, i32) {
    %c0_i32 = arith.constant 0 : i32
    %c0_i32_0 = arith.constant 0 : i32
    %c0_i32_1 = arith.constant 0 : i32
    return %c0_i32, %c0_i32_0 : i32, i32
  }
  func.func @transform_7(%arg0: i32) -> (i32, i32) {
    %c0_i32 = arith.constant 0 : i32
    %c0_i32_0 = arith.constant 0 : i32
    return %arg0, %c0_i32 : i32, i32
  }
  func.func @transform_8(%arg0: i32) -> (i32, i32) {
    %c0_i32 = arith.constant 0 : i32
    %c0_i32_0 = arith.constant 0 : i32
    return %arg0, %c0_i32 : i32, i32
  }
}

</mosaic_0001>

<llo_original>
// kernel: slstm_cell_forward.1
$region0: #{slstm_cell_forward.1}
  #allocation0 [shape = 'u32[]', space=smem, size = 0x4, offset = 0x4, fixed_abs, tag = 'smem constant byte address 0x4 - core index']
  #allocation1 [shape = 'u32[72,128]{1,0:T(1,128)}', space=vmem, size = 0x9000, scoped, tag = 'internal scratch']
  #allocation2 [shape = 'f32[1,1]{1,0:T(1,128)S(1)}', space=vmem, size = 0x200, scoped, tag = 'scoped memory for slstm_cell_forward.1']
  %s0 = inlined_call_operand.hbm [shape: f32[8,16], index: 0, kind: input, shape index: {}]
  %s1 = inlined_call_operand.vmem [shape: f32[8,128], index: 1, kind: input, shape index: {}, may-alias: {1,8}]
  %s2 = inlined_call_operand.vmem [shape: f32[16,128], index: 2, kind: input, shape index: {}]
  %s3 = inlined_call_operand.vmem [shape: f32[32,128], index: 3, kind: input, shape index: {}]
  %s4 = inlined_call_operand.vmem [shape: f32[1,128], index: 4, kind: input, shape index: {}]
  %s5 = inlined_call_operand.vmem [shape: f32[1,32], index: 5, kind: input, shape index: {}]
  %s6 = inlined_call_operand.<no memory space> [shape: f32[1,1], index: 6, kind: input, shape index: {}]
  %s7 = inlined_call_operand.vmem [shape: f32[8,1], index: 7, kind: output, shape index: {0}]
  %s8 = inlined_call_operand.vmem [shape: f32[8,128], index: 8, kind: output, shape index: {1}, may-alias: {1,8}]
  %9 = xla_tuple %s7, %s8
  %s10 = sld [smem:[#allocation0]]
  $region50: #{slstm_cell_forward.1} parent=0
    _
  %s12 = ssub.s32 1, %s10
  %s13 = scalar_select 0, %s12, %s10
  %v14 = vstv %s6
  %15 = vst [vmem:[#allocation2] sm:$0x1] %v14
  $region1: #{slstm_cell_forward.1} parent=0
    #allocation3 [shape = 'u8[4096]{0}', space=vmem, size = 0x1000, scoped, tag = 'input window, operand 0, single buffered']
    #allocation4 [shape = 's32[1]{0}', space=sflag, size = 0x4, scoped, tag = 'scoped memory for slstm_cell_forward.1']
    %16 = vsyncpa [#allocation4], 0
    // Predicated region
    $region2: #{slstm_cell_forward.1} parent=1 // pred_check
      _
    $region3: #{slstm_cell_forward.1} parent=1 // pred_check_branch
      %18 = sbr.rel (0) target = $region5
    $region4: #{slstm_cell_forward.1} parent=1 // pred_region
      %20 = vsyncadd [#allocation4], 0
      %s22 = sshll.u32 %s0, 4
      %s23 = int_to_ptr.hbm [resolvable:$true] %s22
      %s24 = sshll.u32 [#allocation3], 4
      %s25 = int_to_ptr.vmem [resolvable:$true] %s24
      %27 = dma.hbm_to_vmem [thread:$0]  %s23, 128, %s25, [#allocation4]
    $region5: #{slstm_cell_forward.1} parent=1 // pred_fallthru
      _
    // Predicated region
    $region6: #{slstm_cell_forward.1} parent=1 // pred_check
      _
    $region7: #{slstm_cell_forward.1} parent=1 // pred_check_branch
      %29 = sbr.rel (0) target = $region9
    $region8: #{slstm_cell_forward.1} parent=1 // pred_region
      _
    $region9: #{slstm_cell_forward.1} parent=1 // pred_fallthru
      _
    // Predicated region
    $region10: #{slstm_cell_forward.1} parent=1 // pred_check
      _
    $region11: #{slstm_cell_forward.1} parent=1 // pred_check_branch
      %31 = sbr.rel (0) target = $region13
    $region12: #{slstm_cell_forward.1} parent=1 // pred_region
      _
    $region13: #{slstm_cell_forward.1} parent=1 // pred_fallthru
      _
    // Predicated region
    $region14: #{slstm_cell_forward.1} parent=1 // pred_check
      _
    $region15: #{slstm_cell_forward.1} parent=1 // pred_check_branch
      %33 = sbr.rel (0) target = $region17
    $region16: #{slstm_cell_forward.1} parent=1 // pred_region
      _
    $region17: #{slstm_cell_forward.1} parent=1 // pred_fallthru
      _
    // Predicated region
    $region18: #{slstm_cell_forward.1} parent=1 // pred_check
      _
    $region19: #{slstm_cell_forward.1} parent=1 // pred_check_branch
      %35 = sbr.rel (0) target = $region21
    $region20: #{slstm_cell_forward.1} parent=1 // pred_region
      _
    $region21: #{slstm_cell_forward.1} parent=1 // pred_fallthru
      _
    // Predicated region
    $region22: #{slstm_cell_forward.1} parent=1 // pred_check
      _
    $region23: #{slstm_cell_forward.1} parent=1 // pred_check_branch
      %37 = sbr.rel (0) target = $region25
    $region24: #{slstm_cell_forward.1} parent=1 // pred_region
      _
    $region25: #{slstm_cell_forward.1} parent=1 // pred_fallthru
      _
    // Predicated region
    $region26: #{slstm_cell_forward.1} parent=1 // pred_check
      _
    $region27: #{slstm_cell_forward.1} parent=1 // pred_check_branch
      %39 = sbr.rel (0) target = $region29
    $region28: #{slstm_cell_forward.1} parent=1 // pred_region
      _
    $region29: #{slstm_cell_forward.1} parent=1 // pred_fallthru
      _
    // Predicated region
    $region30: #{slstm_cell_forward.1} parent=1 // pred_check
      _
    $region31: #{slstm_cell_forward.1} parent=1 // pred_check_branch
      %41 = sbr.rel (0) target = $region33
    $region32: #{slstm_cell_forward.1} parent=1 // pred_region
      %43 = dma.done [#allocation4], 128
    $region33: #{slstm_cell_forward.1} parent=1 // pred_fallthru
      _
    %v44 = vld [vmem:[#allocation3] sm:$0xff]
    %v45 = vld [vmem:[%s1] sm:$0xff]
    %v46 = vld [vmem:[%s2] sm:$0xff]
    %v47 = vld [vmem:[%s2 + $0x8] sm:$0xff]
    %v48 = vld [vmem:[%s3] sm:$0xff]
    %v49 = vld [vmem:[%s3 + $0x8] sm:$0xff]
    %v50 = vld [vmem:[%s3 + $0x10] sm:$0xff]
    %v51 = vld [vmem:[%s3 + $0x18] sm:$0xff]
    %vm52 = vcmask 261120
    %v54 = vsel %vm52, %v45, 0
    %56 = vmatpush.msra.mxu0 0.0
    %57 = vmatpush.msra.mxu0 0.0
    %58 = vmatpush.msra.mxu0 0.0
    %59 = vmatpush.msra.mxu0 0.0
    %60 = vmatpush.msra.mxu0 0.0
    %61 = vmatpush.msra.mxu0 0.0
    %62 = vmatpush.msra.mxu0 0.0
    %63 = vmatpush.msra.mxu0 0.0
    %64 = vmatpush.msra.mxu0 0.0
    %65 = vmatpush.msra.mxu0 0.0
    %66 = vmatpush.msra.mxu0 0.0
    %67 = vmatpush.msra.mxu0 0.0
    %68 = vmatpush.msra.mxu0 %v51
    %69 = vmatpush.msra.mxu0 %v50
    %70 = vmatpush.msra.mxu0 %v49
    %71 = vmatpush.msra.mxu0 %v48
    %72 = vmatmul.f32.gmra.mxu0 %v54
    %v73 = vpop.f32.mrf.mxu0
    %v74 = vadd.f32 0.0, %v73
    %75 = vdwg.mxu0
    %vm76 = vcmask 130048
    %v78 = vsel %vm76, %v44, 0
    %80 = vmatpush.msra.mxu0 0.0
    %81 = vmatpush.msra.mxu0 0.0
    %82 = vmatpush.msra.mxu0 0.0
    %83 = vmatpush.msra.mxu0 0.0
    %84 = vmatpush.msra.mxu0 0.0
    %85 = vmatpush.msra.mxu0 0.0
    %86 = vmatpush.msra.mxu0 0.0
    %87 = vmatpush.msra.mxu0 0.0
    %88 = vmatpush.msra.mxu0 0.0
    %89 = vmatpush.msra.mxu0 0.0
    %90 = vmatpush.msra.mxu0 0.0
    %91 = vmatpush.msra.mxu0 0.0
    %92 = vmatpush.msra.mxu0 0.0
    %93 = vmatpush.msra.mxu0 0.0
    %94 = vmatpush.msra.mxu0 %v47
    %95 = vmatpush.msra.mxu0 %v46
    %96 = vmatmul.f32.gmra.mxu0 %v78
    %v97 = vpop.f32.mrf.mxu0
    %v98 = vadd.f32 %v74, %v97
    %99 = vdwg.mxu0
    %v100 = vld [vmem:[%s4] sm:$0x1]
    %v102 = vperm.slane %v100, 0
    %v104 = vadd.f32 %v98, %v102
    %v105 = vmin.f32 %v104, 0.0
    %v106 = vand.u32 2147483647, %v104
    %v107 = vsub.f32 0.0, %v106
    %v108 = vmul.f32 %v107, 1.442695
    %v109 = vpow.pop %v108
    %v110 = vadd.f32 %v109, 1.0
    %v111 = vlog2.pop %v110
    %v112 = vmul.f32 %v111, 0.6931472
    %v113 = vsub.f32 %v105, %v112
    %v114 = vsub.f32 0.0, %v104
    %v115 = vmul.f32 %v114, 1.442695
    %v116 = vpow.pop %v115
    %v117 = vadd.f32 %v116, 1.0
    %v118 = vrcp.pop %v117
    %v119 = vmul.f32 %v117, %v118
    %v120 = vsub.f32 1.0, %v119
    %v121 = vmul.f32 %v118, %v120
    %v122 = vadd.f32 %v118, %v121
    %vm123 = vweird.f32 %v117
    %vm124 = vweird.f32 %v118
    %vm125 = vmor %vm123, %vm124
    %v126 = vsel %vm125, %v118, %v122
    %v127 = vand.u32 2147483647, %v117
    %vm128 = vcmp.eq.f32.partialorder %v127, 8.507059e+37
    %v129 = vand.u32 %v117, 2147483648
    %v130 = vor.u32 1.1754944e-38, %v129
    %v131 = vsel %vm128, %v130, %v126
    %v132 = vmul.f32 1.0, %v131
    %v133 = vtanh.pop %v104
    %134 = vrot.lane.b32.xlu0 %v45, 64
    %v135 = vpop.permute.xlu0 %134
    %v137 = vadd.f32 %v113, %v135
    %139 = vrot.lane.b32.xlu0 %v104, 32
    %v140 = vpop.permute.xlu0 %139
    %v142 = vmax.f32 %v137, %v140
    %144 = vrot.lane.b32.xlu0 %v142, 96
    %v145 = vpop.permute.xlu0 %144
    %v147 = vsub.f32 %v104, %v145
    %v148 = vmul.f32 %v147, 1.442695
    %v149 = vpow.pop %v148
    %v150 = vsub.f32 %v137, %v142
    %v151 = vmul.f32 %v150, 1.442695
    %v152 = vpow.pop %v151
    %v153 = vmul.f32 %v152, %v45
    %155 = vrot.lane.b32.xlu0 %v133, 32
    %v156 = vpop.permute.xlu0 %155
    %v158 = vmul.f32 %v149, %v156
    %160 = vrot.lane.b32.xlu0 %v158, 32
    %v161 = vpop.permute.xlu0 %160
    %v163 = vadd.f32 %v153, %v161
    %164 = vrot.lane.b32.xlu0 %v45, 96
    %v165 = vpop.permute.xlu0 %164
    %v167 = vmul.f32 %v152, %v165
    %169 = vrot.lane.b32.xlu0 %v149, 32
    %v170 = vpop.permute.xlu0 %169
    %v172 = vadd.f32 %v167, %v170
    %v173 = vrcp.pop %v172
    %v174 = vmul.f32 %v172, %v173
    %v175 = vsub.f32 1.0, %v174
    %v176 = vmul.f32 %v173, %v175
    %v177 = vadd.f32 %v173, %v176
    %vm178 = vweird.f32 %v172
    %vm179 = vweird.f32 %v173
    %vm180 = vmor %vm178, %vm179
    %v181 = vsel %vm180, %v173, %v177
    %v182 = vand.u32 2147483647, %v172
    %vm183 = vcmp.eq.f32.partialorder %v182, 8.507059e+37
    %v184 = vand.u32 %v172, 2147483648
    %v185 = vor.u32 1.1754944e-38, %v184
    %v186 = vsel %vm183, %v185, %v181
    %v187 = vmul.f32 %v163, %v186
    %189 = vrot.lane.b32.xlu0 %v187, 32
    %v190 = vpop.permute.xlu0 %189
    %v192 = vmul.f32 %v132, %v190
    %v193 = vld [vmem:[%s5] sm:$0x1]
    %v195 = vperm.slane %v193, 0
    %196 = vrot.lane.b32.xlu0 %v195, 64
    %v197 = vpop.permute.xlu0 %196
    %v199 = vmul.f32 %v192, %v197
    %201 = vrot.lane.b32.xlu0 %v199, 64
    %v202 = vpop.permute.xlu0 %201
    %v204 = vsel %vm52, %v202, 0.0
    %205 = vadd.xlane.f32.xlu0 %v204
    %v206 = vpop.xlane.xlu0 %205
    %v207 = vld [vmem:[#allocation2] sm:$0x1]
    %v209 = vperm.slane %v207, 0
    %v211 = vadd.f32 %v206, %v209
    %vm212 = vcmask 7168
    %213 = vst.msk [vmem:[%s7] sm:$0xff] %vm212, %v211
    %215 = vrot.lane.b32.xlu0 %v192, 64
    %v216 = vpop.permute.xlu0 %215
    %218 = vst.msk [vmem:[%s8] sm:$0xff] %vm52, %v216
    %vm219 = vcmask 523520
    %220 = vst.msk [vmem:[%s8] sm:$0xff] %vm219, %v163
    %222 = vrot.lane.b32.xlu0 %v172, 32
    %v223 = vpop.permute.xlu0 %222
    %vm225 = vcmask 785920
    %226 = vst.msk [vmem:[%s8] sm:$0xff] %vm225, %v223
    %227 = vrot.lane.b32.xlu0 %v142, 64
    %v228 = vpop.permute.xlu0 %227
    %vm230 = vcmask 1048320
    %231 = vst.msk [vmem:[%s8] sm:$0xff] %vm230, %v228
    // Predicated region
    $region34: #{slstm_cell_forward.1} parent=1 // pred_check
      _
    $region35: #{slstm_cell_forward.1} parent=1 // pred_check_branch
      %233 = sbr.rel (0) target = $region37
    $region36: #{slstm_cell_forward.1} parent=1 // pred_region
      _
    $region37: #{slstm_cell_forward.1} parent=1 // pred_fallthru
      _
    // Predicated region
    $region38: #{slstm_cell_forward.1} parent=1 // pred_check
      _
    $region39: #{slstm_cell_forward.1} parent=1 // pred_check_branch
      %235 = sbr.rel (0) target = $region41
    $region40: #{slstm_cell_forward.1} parent=1 // pred_region
      _
    $region41: #{slstm_cell_forward.1} parent=1 // pred_fallthru
      _
    // Predicated region
    $region42: #{slstm_cell_forward.1} parent=1 // pred_check
      _
    $region43: #{slstm_cell_forward.1} parent=1 // pred_check_branch
      %237 = sbr.rel (0) target = $region45
    $region44: #{slstm_cell_forward.1} parent=1 // pred_region
      _
    $region45: #{slstm_cell_forward.1} parent=1 // pred_fallthru
      _
    // Predicated region
    $region46: #{slstm_cell_forward.1} parent=1 // pred_check
      _
    $region47: #{slstm_cell_forward.1} parent=1 // pred_check_branch
      %239 = sbr.rel (0) target = $region49
    $region48: #{slstm_cell_forward.1} parent=1 // pred_region
      _
    $region49: #{slstm_cell_forward.1} parent=1 // pred_fallthru
      _
    %240 = vsyncpa [#allocation4], 1

</llo_original>
